<compile_context>
chip_gen: v5e
topology: v5e:2x2
jax: 0.10.0
libtpu: 0.0.40
codegen_flags: <defaults>
</compile_context>

<pallas_src>
import math

import jax
import jax.numpy as jnp
from jax.experimental import pallas as pl
from jax.experimental.pallas import tpu as pltpu


def _make_relu_matvec_kernel(n_chunks, chunk):
    """Builds a kernel computing o = w @ relu(x)^T + b over a tm-row tile.

    The tile is processed in `chunk`-row pieces so the f32 ReLU intermediate
    never exceeds chunk*H*4 bytes regardless of the tile size.
    """

    def kernel(x_ref, w_ref, b_ref, o_ref):
        # x_ref: (tm, H)  node-feature tile (H on the 128-lane axis)
        # w_ref: (1, H)   lane-dense weight row (torch Linear [out, in] layout)
        # b_ref: (1, 1)   bias scalar in SMEM
        # o_ref: (1, tm)  lane-dense output row
        bias = b_ref[0, 0]
        w = w_ref[...]

        def compute(x_tile):
            h1 = jnp.maximum(x_tile, 0.0)                 # ReLU (VPU)
            # (1, H) . (chunk, H)^T -> (1, chunk): contract over H of both
            # operands so the result is produced along lanes (full-width
            # stores, no masked column stores).
            row = jax.lax.dot_general(
                w, h1, (((1,), (1,)), ((), ())),
                preferred_element_type=jnp.float32)
            return row + bias

        if n_chunks == 1:
            o_ref[...] = compute(x_ref[...])
        else:
            def body(c, carry):
                start = pl.multiple_of(c * chunk, chunk)
                o_ref[:, pl.ds(start, chunk)] = compute(
                    x_ref[pl.ds(start, chunk), :])
                return carry

            jax.lax.fori_loop(0, n_chunks, body, 0, unroll=True)

    return kernel


def recurrent_gcn_forward(h_0, weight, bias, *, tm=4096, chunk=1024):
    """out = relu(h_0) @ weight.T + bias  (node_regressor / lin_node head).

    h_0:    [N, H] node embeddings (f32 or bf16)
    weight: [1, H] lin_node weight, PyTorch layout [out_features, in_features]
    bias:   [1]    lin_node bias
    returns [N, 1] f32

    tm:    row tile for the tiled (N > tm) path.  4096 (2 MiB f32) amortizes
           the per-grid-step overhead on v5e/v6e; pass 8192-16384 on v7x.
    chunk: in-kernel sub-tile (bounds the ReLU intermediate independently of tm).
    """
    N, H = h_0.shape
    assert weight.shape == (1, H), "weight must be [1, hidden_dim] (torch layout)"
    w = jnp.asarray(weight, h_0.dtype)                 # match input dtype (bf16 ok)
    b2 = jnp.asarray(bias, jnp.float32).reshape(1, 1)

    itemsize = jnp.dtype(h_0.dtype).itemsize
    cost = pl.CostEstimate(
        flops=3 * N * H,                               # relu compares + matvec
        transcendentals=0,
        bytes_accessed=N * H * itemsize + H * itemsize + 4 + N * 4)

    if N <= tm:
        # Grid collapse: one block covers the whole problem (any N is legal
        # because every block dim equals the full array extent).
        grid = (1,)
        n_chunks, chunk_eff = 1, N
        x_spec = pl.BlockSpec((N, H), lambda i: (0, 0))
        out_spec = pl.BlockSpec((1, N), lambda i: (0, 0))
    else:
        assert tm % 128 == 0, "tile rows must be a multiple of 128 (lane-dense out)"
        assert chunk % 128 == 0, "chunk must be a multiple of 128"
        chunk_eff = math.gcd(tm, chunk)
        n_chunks = tm // chunk_eff
        # No wrapper-side padding: Pallas handles the ragged final block.
        # Unspecified rows in the last input tile only affect output columns
        # >= N, which the masked final output store discards.  Never consume
        # the (1, N) row beyond column N-1 before the reshape below.
        grid = (pl.cdiv(N, tm),)
        x_spec = pl.BlockSpec((tm, H), lambda i: (i, 0),
                              pipeline_mode=pl.Buffered(3))
        out_spec = pl.BlockSpec((1, tm), lambda i: (0, i))

    out_row = pl.pallas_call(
        _make_relu_matvec_kernel(n_chunks, chunk_eff),
        out_shape=jax.ShapeDtypeStruct((1, N), jnp.float32),
        grid_spec=pltpu.PrefetchScalarGridSpec(
            num_scalar_prefetch=0,
            grid=grid,
            in_specs=[
                x_spec,                                               # node tile
                pl.BlockSpec((1, H), lambda i: (0, 0)),               # weight row
                pl.BlockSpec(memory_space=pltpu.MemorySpace.SMEM),    # bias scalar
            ],
            out_specs=out_spec,
        ),
        compiler_params=pltpu.CompilerParams(
            dimension_semantics=("parallel",)),
        cost_estimate=cost,
    )(h_0, w, b2)

    # Layout plumbing only: present the (1, N) lane-dense row as [N, 1].
    return out_row.reshape(N, 1)


def _xavier_uniform(key, fan_in, fan_out, shape):
    limit = (6.0 / (fan_in + fan_out)) ** 0.5
    return jax.random.uniform(key, shape, jnp.float32, -limit, limit)


if __name__ == "__main__":
    HIDDEN = 128                      # hidden_dim (module default)
    key = jax.random.PRNGKey(0)
    k_x1, k_w, k_x2, k_x3 = jax.random.split(key, 4)

    # lin_node (node_regressor): Linear(hidden_dim, 1); torch-layout weight
    # [1, hidden_dim], xavier_uniform init, zero bias (as in the module).
    w = _xavier_uniform(k_w, HIDDEN, 1, (1, HIDDEN))
    b = jnp.zeros((1,), jnp.float32)

    # Case 1: small N -> single-block grid-collapse fast path.
    N1 = 256
    h_0 = jax.random.normal(k_x1, (N1, HIDDEN), jnp.float32)
    out1 = jax.block_until_ready(recurrent_gcn_forward(h_0, w, b))
    ref1 = jnp.maximum(h_0, 0.0) @ w.T + b
    assert out1.shape == (N1, 1)
    assert jnp.allclose(out1, ref1, atol=1e-5, rtol=1e-5), "mismatch (single block)"

    # Case 2: ragged N on the tiled path (no wrapper padding): exercises the
    # partial final input/output blocks, the multi-chunk in-kernel loop and
    # the Buffered(3) input pipeline.  Small tm only to keep the test tiny.
    N2 = 5000
    h_0b = jax.random.normal(k_x2, (N2, HIDDEN), jnp.float32)
    b_nz = jnp.full((1,), 0.1, jnp.float32)
    out2 = jax.block_until_ready(
        recurrent_gcn_forward(h_0b, w, b_nz, tm=2048, chunk=1024))
    ref2 = jnp.maximum(h_0b, 0.0) @ w.T + b_nz
    assert out2.shape == (N2, 1)
    assert jnp.allclose(out2, ref2, atol=1e-5, rtol=1e-5), "mismatch (tiled)"

    # Case 3: bf16 node embeddings (memory-bound kernel -> half the HBM bytes),
    # f32 accumulation inside the kernel.
    h_0c = jax.random.normal(k_x3, (N1, HIDDEN), jnp.bfloat16)
    out3 = jax.block_until_ready(recurrent_gcn_forward(h_0c, w, b))
    w_bf = w.astype(jnp.bfloat16).astype(jnp.float32)
    ref3 = jnp.maximum(h_0c.astype(jnp.float32), 0.0) @ w_bf.T + b
    assert out3.shape == (N1, 1)
    assert jnp.allclose(out3, ref3, atol=1e-2, rtol=1e-2), "mismatch (bf16)"

    print("KERNEL_OK")
</pallas_src>

<mosaic_0001>
module attributes {stable_mosaic.version = 11 : i64} {
  func.func @kernel(%arg0: i32, %arg1: memref<256x128xf32, #tpu.memory_space<vmem>>, %arg2: memref<1x128xf32, #tpu.memory_space<vmem>>, %arg3: memref<1x1xf32, #tpu.memory_space<smem>>, %arg4: memref<1x256xf32, #tpu.memory_space<vmem>>) attributes {dimension_semantics = [#tpu.dimension_semantics<parallel>], iteration_bounds = array<i64: 1>, scalar_prefetch = 0 : i64, scratch_operands = 0 : i64, tpu.core_type = #tpu.core_type<tc>, window_params = [{pipeline_mode = #tpu.pipeline_mode<synchronous>, transform_indices = @transform_0, window_bounds = array<i64: 256, 128>}, {pipeline_mode = #tpu.pipeline_mode<synchronous>, transform_indices = @transform_1, window_bounds = array<i64: 1, 128>}, {transform_indices = @transform_2, window_bounds = array<i64: 1, 1>}, {pipeline_mode = #tpu.pipeline_mode<synchronous>, transform_indices = @transform_3, window_bounds = array<i64: 1, 256>}]} {
    %c0 = arith.constant 0 : index
    %c0_0 = arith.constant 0 : index
    %0 = memref.load %arg3[%c0, %c0_0] : memref<1x1xf32, #tpu.memory_space<smem>>
    %c0_1 = arith.constant 0 : index
    %c0_2 = arith.constant 0 : index
    %1 = vector.load %arg2[%c0_1, %c0_2] : memref<1x128xf32, #tpu.memory_space<vmem>>, vector<1x128xf32>
    %c0_3 = arith.constant 0 : index
    %c0_4 = arith.constant 0 : index
    %2 = vector.load %arg1[%c0_3, %c0_4] : memref<256x128xf32, #tpu.memory_space<vmem>>, vector<256x128xf32>
    %cst = arith.constant 0.000000e+00 : f32
    %3 = vector.broadcast %cst : f32 to vector<256x128xf32>
    %4 = arith.maximumf %2, %3 : vector<256x128xf32>
    %cst_5 = arith.constant dense<0.000000e+00> : vector<1x256xf32>
    %5 = tpu.matmul %1, %4, %cst_5 {dimension_numbers = #tpu.dot_dimension_numbers<[1], [1], [0], [0], [0, 0, 1, 0], [], []>} : vector<1x128xf32>, vector<256x128xf32>, vector<1x256xf32> -> vector<1x256xf32>
    %6 = vector.broadcast %0 : f32 to vector<1x256xf32>
    %7 = arith.addf %5, %6 : vector<1x256xf32>
    %c0_6 = arith.constant 0 : index
    %c0_7 = arith.constant 0 : index
    %8 = vector.load %arg4[%c0_6, %c0_7] : memref<1x256xf32, #tpu.memory_space<vmem>>, vector<1x256xf32>
    tpu.vector_store %arg4[%c0_6, %c0_7], %7 {strides = array<i32>} : memref<1x256xf32, #tpu.memory_space<vmem>>, vector<1x256xf32>,
    return
  }
  func.func @transform_0(%arg0: i32) -> (i32, i32) {
    %c0_i32 = arith.constant 0 : i32
    %c0_i32_0 = arith.constant 0 : i32
    %c0_i32_1 = arith.constant 0 : i32
    return %c0_i32, %c0_i32_0 : i32, i32
  }
  func.func @transform_1(%arg0: i32) -> (i32, i32) {
    %c0_i32 = arith.constant 0 : i32
    %c0_i32_0 = arith.constant 0 : i32
    %c0_i32_1 = arith.constant 0 : i32
    return %c0_i32, %c0_i32_0 : i32, i32
  }
  func.func @transform_2(%arg0: i32) -> (i32, i32) {
    %c0_i32 = arith.constant 0 : i32
    %c0_i32_0 = arith.constant 0 : i32
    %c0_i32_1 = arith.constant 0 : i32
    return %c0_i32, %c0_i32_0 : i32, i32
  }
  func.func @transform_3(%arg0: i32) -> (i32, i32) {
    %c0_i32 = arith.constant 0 : i32
    %c0_i32_0 = arith.constant 0 : i32
    %c0_i32_1 = arith.constant 0 : i32
    return %c0_i32, %c0_i32_0 : i32, i32
  }
}

</mosaic_0001>

<llo_original>
// kernel: tpu_custom_call.1
$region0: #{tpu_custom_call.1}
  #allocation0 [shape = 'u32[]', space=smem, size = 0x4, offset = 0x4, fixed_abs, tag = 'smem constant byte address 0x4 - core index']
  #allocation1 [shape = 'u32[72,128]{1,0:T(1,128)}', space=vmem, size = 0x9000, scoped, tag = 'internal scratch']
  #allocation2 [shape = 'f32[1,1]{1,0:T(1,128)S(6)}', space=smem, size = 0x200, scoped, tag = 'scoped memory for tpu_custom_call.1']
  %s0 = inlined_call_operand.hbm [shape: f32[256,128], index: 0, kind: input, shape index: {}]
  %s1 = inlined_call_operand.vmem [shape: f32[1,128], index: 1, kind: input, shape index: {}]
  %s2 = inlined_call_operand.<no memory space> [shape: f32[1,1], index: 2, kind: input, shape index: {}]
  %s3 = inlined_call_operand.hbm [shape: f32[1,256], index: 3, kind: output, shape index: {}]
  %s4 = sld [smem:[#allocation0]]
  $region26: #{tpu_custom_call.1} parent=0
    _
  %s6 = ssub.s32 1, %s4
  %s7 = scalar_select 0, %s6, %s4
  %8 = sst [smem:[#allocation2]] %s2
  $region1: #{tpu_custom_call.1} parent=0
    #allocation3 [shape = 'u8[131072]{0}', space=vmem, size = 0x20000, scoped, tag = 'input window, operand 0, single buffered']
    #allocation4 [shape = 's32[1]{0}', space=sflag, size = 0x4, scoped, tag = 'scoped memory for tpu_custom_call.1']
    #allocation5 [shape = 's32[1]{0}', space=sflag, size = 0x4, scoped, tag = 'scoped memory for tpu_custom_call.1']
    #allocation6 [shape = 'u8[1024]{0}', space=vmem, size = 0x400, scoped, tag = 'output window, operand 0, single buffered']
    %9 = vsyncpa [#allocation4], 0
    %10 = vsyncpa [#allocation5], 0
    // Predicated region
    $region2: #{tpu_custom_call.1} parent=1 // pred_check
      _
    $region3: #{tpu_custom_call.1} parent=1 // pred_check_branch
      %12 = sbr.rel (0) target = $region5
    $region4: #{tpu_custom_call.1} parent=1 // pred_region
      %14 = vsyncadd [#allocation4], 0
      %s15 = sshll.u32 %s0, 4
      %s16 = int_to_ptr.hbm [resolvable:$true] %s15
      %s17 = sshll.u32 [#allocation3], 4
      %s18 = int_to_ptr.vmem [resolvable:$true] %s17
      %23 = dma.hbm_to_vmem [thread:$0]  %s16, 4096, %s18, [#allocation4], 128, 128, 8
    $region5: #{tpu_custom_call.1} parent=1 // pred_fallthru
      _
    // Predicated region
    $region6: #{tpu_custom_call.1} parent=1 // pred_check
      _
    $region7: #{tpu_custom_call.1} parent=1 // pred_check_branch
      %25 = sbr.rel (0) target = $region9
    $region8: #{tpu_custom_call.1} parent=1 // pred_region
      _
    $region9: #{tpu_custom_call.1} parent=1 // pred_fallthru
      _
    // Predicated region
    $region10: #{tpu_custom_call.1} parent=1 // pred_check
      _
    $region11: #{tpu_custom_call.1} parent=1 // pred_check_branch
      %27 = sbr.rel (0) target = $region13
    $region12: #{tpu_custom_call.1} parent=1 // pred_region
      _
    $region13: #{tpu_custom_call.1} parent=1 // pred_fallthru
      _
    // Predicated region
    $region14: #{tpu_custom_call.1} parent=1 // pred_check
      _
    $region15: #{tpu_custom_call.1} parent=1 // pred_check_branch
      %29 = sbr.rel (0) target = $region17
    $region16: #{tpu_custom_call.1} parent=1 // pred_region
      %31 = dma.done [#allocation4], 4096
    $region17: #{tpu_custom_call.1} parent=1 // pred_fallthru
      _
    %s32 = sld [smem:[#allocation2]]
    %v33 = vld [vmem:[%s1] sm:$0x1]
    %v34 = vld [vmem:[#allocation3] sm:$0xff]
    %v35 = vld [vmem:[#allocation3 + $0x8] sm:$0xff]
    %v36 = vld [vmem:[#allocation3 + $0x10] sm:$0xff]
    %v37 = vld [vmem:[#allocation3 + $0x18] sm:$0xff]
    %v38 = vld [vmem:[#allocation3 + $0x20] sm:$0xff]
    %v39 = vld [vmem:[#allocation3 + $0x28] sm:$0xff]
    %v40 = vld [vmem:[#allocation3 + $0x30] sm:$0xff]
    %v41 = vld [vmem:[#allocation3 + $0x38] sm:$0xff]
    %v42 = vld [vmem:[#allocation3 + $0x40] sm:$0xff]
    %v43 = vld [vmem:[#allocation3 + $0x48] sm:$0xff]
    %v44 = vld [vmem:[#allocation3 + $0x50] sm:$0xff]
    %v45 = vld [vmem:[#allocation3 + $0x58] sm:$0xff]
    %v46 = vld [vmem:[#allocation3 + $0x60] sm:$0xff]
    %v47 = vld [vmem:[#allocation3 + $0x68] sm:$0xff]
    %v48 = vld [vmem:[#allocation3 + $0x70] sm:$0xff]
    %v49 = vld [vmem:[#allocation3 + $0x78] sm:$0xff]
    %v50 = vld [vmem:[#allocation3 + $0x80] sm:$0xff]
    %v51 = vld [vmem:[#allocation3 + $0x88] sm:$0xff]
    %v52 = vld [vmem:[#allocation3 + $0x90] sm:$0xff]
    %v53 = vld [vmem:[#allocation3 + $0x98] sm:$0xff]
    %v54 = vld [vmem:[#allocation3 + $0xa0] sm:$0xff]
    %v55 = vld [vmem:[#allocation3 + $0xa8] sm:$0xff]
    %v56 = vld [vmem:[#allocation3 + $0xb0] sm:$0xff]
    %v57 = vld [vmem:[#allocation3 + $0xb8] sm:$0xff]
    %v58 = vld [vmem:[#allocation3 + $0xc0] sm:$0xff]
    %v59 = vld [vmem:[#allocation3 + $0xc8] sm:$0xff]
    %v60 = vld [vmem:[#allocation3 + $0xd0] sm:$0xff]
    %v61 = vld [vmem:[#allocation3 + $0xd8] sm:$0xff]
    %v62 = vld [vmem:[#allocation3 + $0xe0] sm:$0xff]
    %v63 = vld [vmem:[#allocation3 + $0xe8] sm:$0xff]
    %v64 = vld [vmem:[#allocation3 + $0xf0] sm:$0xff]
    %v65 = vld [vmem:[#allocation3 + $0xf8] sm:$0xff]
    %v66 = vmax.f32 %v34, 0.0
    %v67 = vmax.f32 %v35, 0.0
    %v68 = vmax.f32 %v36, 0.0
    %v69 = vmax.f32 %v37, 0.0
    %v70 = vmax.f32 %v38, 0.0
    %v71 = vmax.f32 %v39, 0.0
    %v72 = vmax.f32 %v40, 0.0
    %v73 = vmax.f32 %v41, 0.0
    %v74 = vmax.f32 %v42, 0.0
    %v75 = vmax.f32 %v43, 0.0
    %v76 = vmax.f32 %v44, 0.0
    %v77 = vmax.f32 %v45, 0.0
    %v78 = vmax.f32 %v46, 0.0
    %v79 = vmax.f32 %v47, 0.0
    %v80 = vmax.f32 %v48, 0.0
    %v81 = vmax.f32 %v49, 0.0
    %v82 = vmax.f32 %v50, 0.0
    %v83 = vmax.f32 %v51, 0.0
    %v84 = vmax.f32 %v52, 0.0
    %v85 = vmax.f32 %v53, 0.0
    %v86 = vmax.f32 %v54, 0.0
    %v87 = vmax.f32 %v55, 0.0
    %v88 = vmax.f32 %v56, 0.0
    %v89 = vmax.f32 %v57, 0.0
    %v90 = vmax.f32 %v58, 0.0
    %v91 = vmax.f32 %v59, 0.0
    %v92 = vmax.f32 %v60, 0.0
    %v93 = vmax.f32 %v61, 0.0
    %v94 = vmax.f32 %v62, 0.0
    %v95 = vmax.f32 %v63, 0.0
    %v96 = vmax.f32 %v64, 0.0
    %v97 = vmax.f32 %v65, 0.0
    %v98 = vstv %s32
    %99 = vmatpush.xpose.msra.mxu0 %v81
    %100 = vmatpush.xpose.msra.mxu0 %v80
    %101 = vmatpush.xpose.msra.mxu0 %v79
    %102 = vmatpush.xpose.msra.mxu0 %v78
    %103 = vmatpush.xpose.msra.mxu0 %v77
    %104 = vmatpush.xpose.msra.mxu0 %v76
    %105 = vmatpush.xpose.msra.mxu0 %v75
    %106 = vmatpush.xpose.msra.mxu0 %v74
    %107 = vmatpush.xpose.msra.mxu0 %v73
    %108 = vmatpush.xpose.msra.mxu0 %v72
    %109 = vmatpush.xpose.msra.mxu0 %v71
    %110 = vmatpush.xpose.msra.mxu0 %v70
    %111 = vmatpush.xpose.msra.mxu0 %v69
    %112 = vmatpush.xpose.msra.mxu0 %v68
    %113 = vmatpush.xpose.msra.mxu0 %v67
    %114 = vmatpush.xpose.msra.mxu0 %v66
    %115 = vmatmul.f32.gmra.mxu0 %v33
    %v116 = vpop.f32.mrf.mxu0
    %v117 = vadd.f32 %v98, %v116
    %118 = vdwg.mxu0
    %119 = vmatpush.xpose.msra.mxu0 %v97
    %120 = vmatpush.xpose.msra.mxu0 %v96
    %121 = vmatpush.xpose.msra.mxu0 %v95
    %122 = vmatpush.xpose.msra.mxu0 %v94
    %123 = vmatpush.xpose.msra.mxu0 %v93
    %124 = vmatpush.xpose.msra.mxu0 %v92
    %125 = vmatpush.xpose.msra.mxu0 %v91
    %126 = vmatpush.xpose.msra.mxu0 %v90
    %127 = vmatpush.xpose.msra.mxu0 %v89
    %128 = vmatpush.xpose.msra.mxu0 %v88
    %129 = vmatpush.xpose.msra.mxu0 %v87
    %130 = vmatpush.xpose.msra.mxu0 %v86
    %131 = vmatpush.xpose.msra.mxu0 %v85
    %132 = vmatpush.xpose.msra.mxu0 %v84
    %133 = vmatpush.xpose.msra.mxu0 %v83
    %134 = vmatpush.xpose.msra.mxu0 %v82
    %135 = vmatmul.f32.gmra.mxu0 %v33
    %v136 = vpop.f32.mrf.mxu0
    %v137 = vadd.f32 %v98, %v136
    %138 = vdwg.mxu0
    %v141 = vrot.slane %v137, 7
    %vm142 = vcmask 1040384
    %v143 = vsel %vm142, %v117, %v141
    %v145 = vlaneseq
    %vm146 = vcmp.ge.s32.totalorder %v145, 0
    %vm147 = vcmp.lt.s32.totalorder %v145, 256
    %vm148 = vmand %vm146, %vm147
    %149 = vst.msk [vmem:[#allocation6] sm:$0x3] %vm148, %v143
    // Predicated region
    $region18: #{tpu_custom_call.1} parent=1 // pred_check
      _
    $region19: #{tpu_custom_call.1} parent=1 // pred_check_branch
      %151 = sbr.rel (0) target = $region21
    $region20: #{tpu_custom_call.1} parent=1 // pred_region
      %153 = vsyncadd [#allocation5], 0
      %s155 = sshll.u32 [#allocation6], 4
      %s156 = int_to_ptr.vmem [resolvable:$true] %s155
      %s157 = sshll.u32 %s3, 4
      %s158 = int_to_ptr.hbm [resolvable:$true] %s157
      %160 = dma.vmem_to_hbm [thread:$0]  %s156, 32, %s158, [#allocation5]
    $region21: #{tpu_custom_call.1} parent=1 // pred_fallthru
      _
    // Predicated region
    $region22: #{tpu_custom_call.1} parent=1 // pred_check
      _
    $region23: #{tpu_custom_call.1} parent=1 // pred_check_branch
      %162 = sbr.rel (0) target = $region25
    $region24: #{tpu_custom_call.1} parent=1 // pred_region
      %164 = dma.done [#allocation5], 32
    $region25: #{tpu_custom_call.1} parent=1 // pred_fallthru
      _
    %165 = vsyncpa [#allocation4], 1
    %166 = vsyncpa [#allocation5], 1

</llo_original>
